<compile_context>
chip_gen: v6e
topology: v6e:2x2x1
jax: 0.10.0
libtpu: 0.0.40
codegen_flags: <defaults>
</compile_context>

<pallas_src>
import math
from functools import partial

import jax
import jax.numpy as jnp
from jax.experimental import pallas as pl
from jax.experimental.pallas import tpu as pltpu


def _round_up(x, m):
    return (x + m - 1) // m * m


# ----------------------------- Pallas kernel --------------------------------
def _conv_bn_act_kernel(x_ref, w_ref, shift_ref, o_ref, acc_ref, *, apply_relu):
    # Grid = (B, C2-tiles, HW-tiles, C1-tiles); the innermost C1 axis is the
    # reduction axis.  Accumulate W_tile @ X_tile on the MXU into an f32 VMEM
    # scratch; on the last reduction step apply the folded-BN shift + ReLU in
    # f32 (no bf16 VALU needed -> v5e-safe) and store in the output dtype.
    k = pl.program_id(3)

    @pl.when(k == 0)
    def _init():
        acc_ref[...] = jnp.zeros_like(acc_ref)

    acc_ref[...] += jnp.dot(w_ref[...], x_ref[...],
                            preferred_element_type=jnp.float32)

    @pl.when(k == pl.num_programs(3) - 1)
    def _finalize():
        y = acc_ref[...] + shift_ref[...]
        if apply_relu:
            y = jnp.maximum(y, 0.0)
        o_ref[...] = y.astype(o_ref.dtype)


# ----------------------------- tiling heuristics -----------------------------
def _chan_tile(c):
    # Match MXU-native tiles (256 on v6e/v7x, 128 on v5e) for large channel
    # counts; otherwise use the full (small) channel extent.
    for t in (256, 128):
        if c > t and c % t == 0:
            return t
    return c


def _vmem_capacity_bytes():
    try:
        return int(pltpu.get_tpu_info().vmem_capacity_bytes)
    except Exception:
        return 128 * 1024 * 1024


def _choose_tiles(hw, c1, c2, x_itemsize, out_itemsize, batch):
    vmem_cap = _vmem_capacity_bytes()
    # Chip-aware working-set budget: ~16 MiB on v7x (64 MiB VMEM, 2 TCs/chip),
    # ~24 MiB on the 128 MiB parts (v5e/v6e).
    budget = min(vmem_cap // 4, 24 * 1024 * 1024)

    tc2 = _chan_tile(c2)
    tc1 = _chan_tile(c1)

    # Triple-buffer the x tile when the per-step MXU work is tiny (small C1*C2)
    # so DMA issue latency is hidden.
    x_bufs = 3 if tc1 * tc2 <= 128 * 128 else 2

    # Resident (single-buffered) operands: weight tile + shift.
    resident = tc2 * tc1 * x_itemsize + tc2 * 4
    # Per-lane-column streaming cost: pipelined x tile, pipelined output tile,
    # and the f32 accumulator scratch.
    per_col = (x_bufs * tc1 * x_itemsize
               + 2 * tc2 * out_itemsize
               + tc2 * 4)
    avail = max(budget - resident, 2 * 1024 * 1024)
    tn = (avail // per_col) // 128 * 128
    tn = max(128, min(tn, 4096, _round_up(hw, 128)))   # lane-dense, bounded

    if batch <= 2:
        # v7x has 2 TensorCores/chip sharing HBM: bias the spatial tiling so
        # there are >= ~4 parallel blocks, but keep tiles >= 512 lanes (or the
        # whole row when it is shorter than that).
        target = max(_round_up(pl.cdiv(hw, 4), 128),
                     min(512, _round_up(hw, 128)))
        tn = min(tn, target)

    hw_pad = _round_up(hw, tn)
    return tc1, tc2, tn, hw_pad, x_bufs, vmem_cap


# ------------------------------ pallas_call wrapper ---------------------------
def _bspec(block_shape, index_map, mode):
    if mode is None:
        return pl.BlockSpec(block_shape, index_map)
    return pl.BlockSpec(block_shape, index_map, pipeline_mode=mode)


def _pallas_conv(x3, w, shift, out_dtype, relu, tiles, use_pipeline_hints):
    B, C1, HWp = x3.shape
    C2 = w.shape[0]
    tc1, tc2, tn, x_bufs, vmem_cap = tiles

    n_c2 = C2 // tc2
    n_j = HWp // tn
    n_k = C1 // tc1
    grid = (B, n_c2, n_j, n_k)

    w_invariant = (n_c2 == 1 and n_k == 1)
    shift_invariant = (n_c2 == 1)

    if use_pipeline_hints:
        x_mode = pl.Buffered(x_bufs) if x_bufs != 2 else None
        w_mode = pl.Buffered(1) if w_invariant else None
        s_mode = pl.Buffered(1) if shift_invariant else None
    else:
        x_mode = w_mode = s_mode = None

    in_specs = [
        _bspec((None, tc1, tn), lambda b, i, j, k: (b, k, j), x_mode),   # x tile
        _bspec((tc2, tc1), lambda b, i, j, k: (i, k), w_mode),           # folded weight
        _bspec((tc2, 1), lambda b, i, j, k: (i, 0), s_mode),             # folded shift
    ]
    out_specs = pl.BlockSpec((None, tc2, tn), lambda b, i, j, k: (b, i, j))

    # Explicit scoped-VMEM limit = actual working set + headroom (covers the
    # resident weight buffers that the previous heuristic ignored).
    xb = x_bufs if use_pipeline_hints else 2
    w_bufs = 1 if (use_pipeline_hints and w_invariant) else 2
    s_bufs = 1 if (use_pipeline_hints and shift_invariant) else 2
    out_itemsize = jnp.dtype(out_dtype).itemsize
    working_set = (xb * tc1 * tn * x3.dtype.itemsize
                   + 2 * tc2 * tn * out_itemsize
                   + w_bufs * tc2 * tc1 * w.dtype.itemsize
                   + s_bufs * tc2 * 4
                   + tc2 * tn * 4)
    vmem_limit = max(int(working_set * 1.5) + (2 << 20), 32 << 20)
    vmem_limit = min(vmem_limit, vmem_cap * 3 // 4)

    flops = 2 * B * HWp * C1 * C2
    bytes_accessed = (x3.size * x3.dtype.itemsize
                      + w.size * w.dtype.itemsize
                      + shift.size * shift.dtype.itemsize
                      + B * C2 * HWp * out_itemsize)

    return pl.pallas_call(
        partial(_conv_bn_act_kernel, apply_relu=relu),
        out_shape=jax.ShapeDtypeStruct((B, C2, HWp), out_dtype),
        grid_spec=pltpu.PrefetchScalarGridSpec(
            num_scalar_prefetch=0,
            grid=grid,
            in_specs=in_specs,
            out_specs=out_specs,
            scratch_shapes=[pltpu.VMEM((tc2, tn), jnp.float32)],
        ),
        compiler_params=pltpu.CompilerParams(
            dimension_semantics=("parallel", "parallel", "parallel", "arbitrary"),
            vmem_limit_bytes=int(vmem_limit)),
        cost_estimate=pl.CostEstimate(
            flops=flops, transcendentals=0, bytes_accessed=bytes_accessed),
    )(x3, w, shift)


def conv1x1_bn_relu(x, w, shift, *, relu=True):
    """x: (B, C1, H, W) NCHW; w: (C2, C1) with the BN scale pre-folded;
    shift: (C2, 1) f32.  Returns (B, C2, H, W) in x.dtype."""
    B, C1, H, W = x.shape
    C2 = w.shape[0]
    HW = H * W

    tc1, tc2, tn, hw_pad, x_bufs, vmem_cap = _choose_tiles(
        HW, C1, C2, x.dtype.itemsize, x.dtype.itemsize, B)

    x3 = x.reshape(B, C1, HW)                       # contiguous reshape, no transpose
    if hw_pad != HW:
        # Zero-pad the spatial axis so every block is full: lane-dense DMA and
        # unmasked full-vreg stores on all chip generations.
        x3 = jnp.pad(x3, ((0, 0), (0, 0), (0, hw_pad - HW)))

    tiles = (tc1, tc2, tn, x_bufs, vmem_cap)
    out3 = None
    for hints in (True, False):
        try:
            out3 = _pallas_conv(x3, w, shift, x.dtype, relu, tiles, hints)
            break
        except Exception:
            if not hints:
                raise   # real failure, not a pipeline_mode-support issue

    if hw_pad != HW:
        out3 = out3[:, :, :HW]
    return out3.reshape(B, C2, H, W)


# ------------------------------ Module wrapper -------------------------------
class ConvPallas:
    """PyTorch `Conv` block: act(norm(conv(x))) with conv=Conv2d(c1,c2,k,s,autopad),
    norm=BatchNorm2d (eval-mode running stats), act=ReLU."""

    def __init__(self, c1, c2, k=1, s=1, p=None, d=None, act=True, norm=True, g=1,
                 compute_dtype=jnp.float32, key=None):
        # TODO(synk): only the default k=1, s=1 (autopad=0), g=1 dense path is
        # implemented; general kxk / strided / grouped convs need an im2col or
        # sliding-window kernel.
        assert k == 1 and s == 1 and g == 1, "only k=1, s=1, g=1 supported"
        if key is None:
            key = jax.random.PRNGKey(0)
        self.c1, self.c2 = c1, c2
        self.use_norm = norm is True
        self.use_act = act is True
        self.compute_dtype = compute_dtype

        kw, kb = jax.random.split(key)
        fan_in = c1 * k * k
        bound = 1.0 / math.sqrt(fan_in)
        # torch Conv2d weight (c2, c1, 1, 1) -> stored (c2, c1) for W @ X(C1, HW)
        self.w = jax.random.uniform(kw, (c2, c1), jnp.float32, -bound, bound)
        # conv bias only exists when norm is False (Conv2d(..., bias=norm is False))
        self.conv_bias = (jax.random.uniform(kb, (c2,), jnp.float32, -bound, bound)
                          if not self.use_norm else jnp.zeros((c2,), jnp.float32))
        # BatchNorm2d parameters / running stats (inference mode)
        self.bn_gamma = jnp.ones((c2,), jnp.float32)
        self.bn_beta = jnp.zeros((c2,), jnp.float32)
        self.bn_mean = jnp.zeros((c2,), jnp.float32)
        self.bn_var = jnp.ones((c2,), jnp.float32)
        self.bn_eps = 1e-5

    def __call__(self, x):
        # Fold BatchNorm (eval-mode) into the weight (scale) and a per-channel shift.
        if self.use_norm:
            inv_std = 1.0 / jnp.sqrt(self.bn_var + self.bn_eps)
            scale = self.bn_gamma * inv_std
            shift = self.bn_beta - self.bn_mean * scale
            w = self.w * scale[:, None]
        else:
            w = self.w
            shift = self.conv_bias
        cdt = self.compute_dtype
        return conv1x1_bn_relu(
            x.astype(cdt), w.astype(cdt),
            shift.reshape(self.c2, 1).astype(jnp.float32),
            relu=self.use_act)


# --------------------------------- main --------------------------------------
if __name__ == "__main__":
    key = jax.random.PRNGKey(0)
    k_x, k_par = jax.random.split(key)

    B, c1, c2 = 2, 4, 8
    H, W = 16, 16
    x = jax.random.normal(k_x, (B, c1, H, W), jnp.float32)

    # f32 path (matches the PyTorch eval-mode reference numerics)
    block = ConvPallas(c1, c2, k=1, s=1, key=k_par)
    out = jax.block_until_ready(block(x))

    # pure-JAX reference
    conv_ref = jnp.einsum("oc,bchw->bohw", block.w, x)
    inv_std = 1.0 / jnp.sqrt(block.bn_var + block.bn_eps)
    bn_scale = (block.bn_gamma * inv_std)[None, :, None, None]
    bn_shift = (block.bn_beta - block.bn_mean * block.bn_gamma * inv_std)[None, :, None, None]
    ref = jnp.maximum(conv_ref * bn_scale + bn_shift, 0.0)

    assert out.shape == (B, c2, H, W)
    assert jnp.allclose(out, ref, atol=1e-4, rtol=1e-4)

    # bf16 MXU-operand path (v6e/v7x bandwidth lever); f32 accumulation and f32
    # epilogue are kept, so only operand-cast error vs the f32 reference.
    block_bf16 = ConvPallas(c1, c2, k=1, s=1, compute_dtype=jnp.bfloat16, key=k_par)
    out_bf16 = jax.block_until_ready(block_bf16(x))
    assert out_bf16.shape == (B, c2, H, W)
    assert jnp.allclose(out_bf16.astype(jnp.float32), ref, atol=5e-2, rtol=5e-2)

    print("KERNEL_OK")
</pallas_src>

<mosaic_0001>
module attributes {stable_mosaic.version = 11 : i64} {
  func.func @_conv_bn_act_kernel(%arg0: i32, %arg1: i32, %arg2: i32, %arg3: i32, %arg4: memref<1x4x256xf32, #tpu.memory_space<vmem>>, %arg5: memref<8x4xf32, #tpu.memory_space<vmem>>, %arg6: memref<8x1xf32, #tpu.memory_space<vmem>>, %arg7: memref<1x8x256xf32, #tpu.memory_space<vmem>>, %arg8: memref<8x256xf32, #tpu.memory_space<vmem>>) attributes {dimension_semantics = [#tpu.dimension_semantics<parallel>, #tpu.dimension_semantics<parallel>, #tpu.dimension_semantics<parallel>, #tpu.dimension_semantics<arbitrary>], iteration_bounds = array<i64: 2, 1, 1, 1>, scalar_prefetch = 0 : i64, scratch_operands = 1 : i64, tpu.core_type = #tpu.core_type<tc>, window_params = [{transform_indices = @transform_0, window_bounds = array<i64: 1, 4, 256>}, {transform_indices = @transform_1, window_bounds = array<i64: 8, 4>}, {transform_indices = @transform_2, window_bounds = array<i64: 8, 1>}, {transform_indices = @transform_3, window_bounds = array<i64: 1, 8, 256>}]} {
    %c0_i32 = arith.constant 0 : i32
    %0 = arith.cmpi eq, %arg3, %c0_i32 : i32
    %1 = arith.extui %0 : i1 to i32
    %c0_i32_0 = arith.constant 0 : i32
    %2 = arith.cmpi ne, %1, %c0_i32_0 : i32
    scf.if %2 {
      %cst_11 = arith.constant 0.000000e+00 : f32
      %13 = vector.broadcast %cst_11 : f32 to vector<8x256xf32>
      %c0_12 = arith.constant 0 : index
      %c0_13 = arith.constant 0 : index
      %14 = vector.load %arg8[%c0_12, %c0_13] : memref<8x256xf32, #tpu.memory_space<vmem>>, vector<8x256xf32>
      tpu.vector_store %arg8[%c0_12, %c0_13], %13 {strides = array<i32>} : memref<8x256xf32, #tpu.memory_space<vmem>>, vector<8x256xf32>,
    } else {
    }
    %c0 = arith.constant 0 : index
    %c0_1 = arith.constant 0 : index
    %3 = vector.load %arg8[%c0, %c0_1] : memref<8x256xf32, #tpu.memory_space<vmem>>, vector<8x256xf32>
    %c0_2 = arith.constant 0 : index
    %c0_3 = arith.constant 0 : index
    %4 = vector.load %arg5[%c0_2, %c0_3] : memref<8x4xf32, #tpu.memory_space<vmem>>, vector<8x4xf32>
    %c0_4 = arith.constant 0 : index
    %c0_5 = arith.constant 0 : index
    %c0_6 = arith.constant 0 : index
    %5 = vector.load %arg4[%c0_4, %c0_5, %c0_6] : memref<1x4x256xf32, #tpu.memory_space<vmem>>, vector<1x4x256xf32>
    %6 = vector.shape_cast %5 : vector<1x4x256xf32> to vector<4x256xf32>
    %cst = arith.constant dense<0.000000e+00> : vector<8x256xf32>
    %7 = tpu.matmul %4, %6, %cst {dimension_numbers = #tpu.dot_dimension_numbers<[1], [0], [0], [1], [0, 0, 1, 1], [], []>} : vector<8x4xf32>, vector<4x256xf32>, vector<8x256xf32> -> vector<8x256xf32>
    %8 = arith.addf %3, %7 : vector<8x256xf32>
    %c0_7 = arith.constant 0 : index
    %c0_8 = arith.constant 0 : index
    %9 = vector.load %arg8[%c0_7, %c0_8] : memref<8x256xf32, #tpu.memory_space<vmem>>, vector<8x256xf32>
    tpu.vector_store %arg8[%c0_7, %c0_8], %8 {strides = array<i32>} : memref<8x256xf32, #tpu.memory_space<vmem>>, vector<8x256xf32>,
    %c0_i32_9 = arith.constant 0 : i32
    %10 = arith.cmpi eq, %arg3, %c0_i32_9 : i32
    %11 = arith.extui %10 : i1 to i32
    %c0_i32_10 = arith.constant 0 : i32
    %12 = arith.cmpi ne, %11, %c0_i32_10 : i32
    scf.if %12 {
      %c0_11 = arith.constant 0 : index
      %c0_12 = arith.constant 0 : index
      %13 = vector.load %arg8[%c0_11, %c0_12] : memref<8x256xf32, #tpu.memory_space<vmem>>, vector<8x256xf32>
      %c0_13 = arith.constant 0 : index
      %c0_14 = arith.constant 0 : index
      %14 = vector.load %arg6[%c0_13, %c0_14] : memref<8x1xf32, #tpu.memory_space<vmem>>, vector<8x1xf32>
      %15 = vector.broadcast %14 : vector<8x1xf32> to vector<8x256xf32>
      %16 = arith.addf %13, %15 : vector<8x256xf32>
      %cst_15 = arith.constant 0.000000e+00 : f32
      %17 = vector.broadcast %cst_15 : f32 to vector<8x256xf32>
      %18 = arith.maximumf %16, %17 : vector<8x256xf32>
      %c0_16 = arith.constant 0 : index
      %c0_17 = arith.constant 0 : index
      %c0_18 = arith.constant 0 : index
      %19 = vector.load %arg7[%c0_16, %c0_17, %c0_18] : memref<1x8x256xf32, #tpu.memory_space<vmem>>, vector<1x8x256xf32>
      %20 = vector.shape_cast %19 : vector<1x8x256xf32> to vector<8x256xf32>
      %21 = vector.shape_cast %18 : vector<8x256xf32> to vector<1x8x256xf32>
      tpu.vector_store %arg7[%c0_16, %c0_17, %c0_18], %21 {strides = array<i32>} : memref<1x8x256xf32, #tpu.memory_space<vmem>>, vector<1x8x256xf32>,
    } else {
    }
    return
  }
  func.func @transform_0(%arg0: i32, %arg1: i32, %arg2: i32, %arg3: i32) -> (i32, i32, i32) {
    %c0_i32 = arith.constant 0 : i32
    return %arg0, %arg3, %arg2 : i32, i32, i32
  }
  func.func @transform_1(%arg0: i32, %arg1: i32, %arg2: i32, %arg3: i32) -> (i32, i32) {
    %c0_i32 = arith.constant 0 : i32
    return %arg1, %arg3 : i32, i32
  }
  func.func @transform_2(%arg0: i32, %arg1: i32, %arg2: i32, %arg3: i32) -> (i32, i32) {
    %c0_i32 = arith.constant 0 : i32
    %c0_i32_0 = arith.constant 0 : i32
    return %arg1, %c0_i32 : i32, i32
  }
  func.func @transform_3(%arg0: i32, %arg1: i32, %arg2: i32, %arg3: i32) -> (i32, i32, i32) {
    %c0_i32 = arith.constant 0 : i32
    return %arg0, %arg1, %arg2 : i32, i32, i32
  }
}

</mosaic_0001>

<llo_original>
// kernel: tpu_custom_call.1
$region0: #{tpu_custom_call.1}
  #allocation0 [shape = 'u32[]', space=smem, size = 0x4, offset = 0x4, fixed_abs, tag = 'smem constant byte address 0x4 - core index']
  #allocation1 [shape = 'u32[144,128]{1,0:T(1,128)}', space=vmem, size = 0x12000, scoped, tag = 'internal scratch']
  #allocation2 [shape = 'f32[8,256]{1,0:T(8,128)}', space=vmem, size = 0x2000, scoped, tag = 'scratch operand']
  %s0 = inlined_call_operand.vmem [shape: f32[2,4,256], index: 0, kind: input, shape index: {}]
  %s1 = inlined_call_operand.vmem [shape: f32[8,4], index: 1, kind: input, shape index: {}]
  %s2 = inlined_call_operand.vmem [shape: f32[8,1], index: 2, kind: input, shape index: {}]
  %s3 = inlined_call_operand.hbm [shape: f32[2,8,256], index: 3, kind: output, shape index: {}]
  %s4 = sld [smem:[#allocation0]]
  $region53: #{tpu_custom_call.1} parent=0
    _
  %s6 = ssub.s32 1, %s4
  %s7 = scalar_select 0, %s6, %s4
  $region1: #{tpu_custom_call.1} parent=0
    #allocation3 [shape = 'u8[16384]{0}', space=vmem, size = 0x4000, scoped, tag = 'output window, operand 0']
    #allocation4 [shape = 's32[2]{0}', space=sflag, size = 0x8, scoped, tag = 'scoped memory for tpu_custom_call.1']
    %8 = vsyncpa [#allocation4], 0
    %s9 = scalar_lea.sflag [#allocation4], 1
    %10 = vsyncpa %s9, 0
    loop: start=0, step=1, limit=4
    $region2: #{tpu_custom_call.1} parent=1 // loop_pre_header
      _
    $region3: #{tpu_custom_call.1} parent=1 // loop_header
      %s12 = sphi 0, %s16
      %p13 = scmp.ge.s32.totalorder %s12, 4
      %s19 = sphi 0, %s45
      %s20 = sphi 0, %s41
      %s21 = sphi 0, %s37
      %s22 = sphi 0, %s33
      %s23 = sphi 0, %s19
      %s24 = sphi 0, %s20
      %s25 = sphi 0, %s21
      %s26 = sphi 0, %s22
      %s27 = sphi 0, %s23
      %s28 = sphi 0, %s24
      %s29 = sphi 0, %s25
      %s30 = sphi 0, %s26
      %s52 = sphi 0, %s54
      %s55 = sphi 0, %s52
      %s56 = sphi 0, %s55
      %s72 = sphi 0, %s56
      %s80 = sphi 0, %s82
      %s83 = sphi 0, %s80
      %s84 = sphi 0, %s83
      %s100 = sphi 0, %s84
      %s106 = sphi 0, %s108
      %s109 = sphi 0, %s106
      %s110 = sphi 0, %s109
      %s126 = sphi 0, %s110
      %s136 = sphi 0, %s138
      %s139 = sphi 0, %s136
      %s140 = sphi 0, %s139
      %s156 = sphi 0, %s140
    $region4: #{tpu_custom_call.1} parent=1 // loop_header_branch
      %15 = sbr.rel (%p13) target = $region8
    $region5: #{tpu_custom_call.1} parent=1 // loop_body
      %s17 = ssub.s32 %s12, 1
      %s18 = ssub.s32 %s12, 2
      %s31 = sadd.s32 1, %s22
      %p32 = scmp.ge.s32.totalorder %s31, 1
      %s33 = scalar_select %p32, 0, %s31
      %s34 = sadd.s32 1, %s21
      %s35 = scalar_select %p32, %s34, %s21
      %p36 = scmp.ge.s32.totalorder %s35, 1
      %s37 = scalar_select %p36, 0, %s35
      %s38 = sadd.s32 1, %s20
      %s39 = scalar_select %p36, %s38, %s20
      %p40 = scmp.ge.s32.totalorder %s39, 1
      %s41 = scalar_select %p40, 0, %s39
      %s42 = sadd.s32 1, %s19
      %s43 = scalar_select %p40, %s42, %s19
      %p44 = scmp.ge.s32.totalorder %s43, 2
      %s45 = scalar_select %p44, 0, %s43
      %s46 = ssub.s32 %s19, %s45
      %s47 = ssub.s32 %s22, %s33
      %s48 = sor.u32 %s46, %s47
      %s49 = ssub.s32 %s21, %s37
      %s50 = sor.u32 %s48, %s49
      %p51 = scmp.eq.s32.totalorder %s50, 0
      %s53 = sadd.s32 %s52, 1
      %s54 = scalar_select %p51, %s52, %s53
      %p57 = pneg %p51
      %p58 = scmp.eq.s32.totalorder %s12, 1
      %p59 = por %p57, %p58
      %p60 = scmp.ne.s32.totalorder %s52, %s55
      %p61 = scmp.eq.s32.totalorder %s12, 0
      %p62 = por %p60, %p61
      %p63 = scmp.ne.s32.totalorder %s52, %s55
      %p64 = scmp.eq.s32.totalorder %s17, 1
      %p65 = por %p63, %p64
      %p66 = scmp.ne.s32.totalorder %s55, %s56
      %p67 = scmp.eq.s32.totalorder %s17, 0
      %p68 = por %p66, %p67
      %p69 = scmp.ne.s32.totalorder %s55, %s56
      %p70 = scmp.eq.s32.totalorder %s18, 1
      %p71 = por %p69, %p70
      %p73 = scmp.ne.s32.totalorder %s56, %s72
      %p74 = scmp.eq.s32.totalorder %s18, 0
      %p75 = por %p73, %p74
      %s76 = ssub.s32 %s20, %s41
      %s77 = ssub.s32 %s22, %s33
      %s78 = sor.u32 %s76, %s77
      %p79 = scmp.eq.s32.totalorder %s78, 0
      %s81 = sadd.s32 %s80, 1
      %s82 = scalar_select %p79, %s80, %s81
      %p85 = pneg %p79
      %p86 = scmp.eq.s32.totalorder %s12, 1
      %p87 = por %p85, %p86
      %p88 = scmp.ne.s32.totalorder %s80, %s83
      %p89 = scmp.eq.s32.totalorder %s12, 0
      %p90 = por %p88, %p89
      %p91 = scmp.ne.s32.totalorder %s80, %s83
      %p92 = scmp.eq.s32.totalorder %s17, 1
      %p93 = por %p91, %p92
      %p94 = scmp.ne.s32.totalorder %s83, %s84
      %p95 = scmp.eq.s32.totalorder %s17, 0
      %p96 = por %p94, %p95
      %p97 = scmp.ne.s32.totalorder %s83, %s84
      %p98 = scmp.eq.s32.totalorder %s18, 1
      %p99 = por %p97, %p98
      %p101 = scmp.ne.s32.totalorder %s84, %s100
      %p102 = scmp.eq.s32.totalorder %s18, 0
      %p103 = por %p101, %p102
      %s104 = ssub.s32 %s20, %s41
      %p105 = scmp.eq.s32.totalorder %s104, 0
      %s107 = sadd.s32 %s106, 1
      %s108 = scalar_select %p105, %s106, %s107
      %p111 = pneg %p105
      %p112 = scmp.eq.s32.totalorder %s12, 1
      %p113 = por %p111, %p112
      %p114 = scmp.ne.s32.totalorder %s106, %s109
      %p115 = scmp.eq.s32.totalorder %s12, 0
      %p116 = por %p114, %p115
      %p117 = scmp.ne.s32.totalorder %s106, %s109
      %p118 = scmp.eq.s32.totalorder %s17, 1
      %p119 = por %p117, %p118
      %p120 = scmp.ne.s32.totalorder %s109, %s110
      %p121 = scmp.eq.s32.totalorder %s17, 0
      %p122 = por %p120, %p121
      %p123 = scmp.ne.s32.totalorder %s109, %s110
      %p124 = scmp.eq.s32.totalorder %s18, 1
      %p125 = por %p123, %p124
      %p127 = scmp.ne.s32.totalorder %s110, %s126
      %p128 = scmp.eq.s32.totalorder %s18, 0
      %p129 = por %p127, %p128
      %s130 = ssub.s32 %s19, %s45
      %s131 = ssub.s32 %s20, %s41
      %s132 = sor.u32 %s130, %s131
      %s133 = ssub.s32 %s21, %s37
      %s134 = sor.u32 %s132, %s133
      %p135 = scmp.eq.s32.totalorder %s134, 0
      %s137 = sadd.s32 %s136, 1
      %s138 = scalar_select %p135, %s136, %s137
      %p141 = pneg %p135
      %p142 = scmp.eq.s32.totalorder %s12, 1
      %p143 = por %p141, %p142
      %p144 = scmp.ne.s32.totalorder %s136, %s139
      %p145 = scmp.eq.s32.totalorder %s12, 0
      %p146 = por %p144, %p145
      %p147 = scmp.ne.s32.totalorder %s136, %s139
      %p148 = scmp.eq.s32.totalorder %s17, 1
      %p149 = por %p147, %p148
      %p150 = scmp.ne.s32.totalorder %s139, %s140
      %p151 = scmp.eq.s32.totalorder %s17, 0
      %p152 = por %p150, %p151
      %p153 = scmp.ne.s32.totalorder %s139, %s140
      %p154 = scmp.eq.s32.totalorder %s18, 1
      %p155 = por %p153, %p154
      %p157 = scmp.ne.s32.totalorder %s140, %s156
      %p158 = scmp.eq.s32.totalorder %s18, 0
      %p159 = por %p157, %p158
      %p160 = scmp.le.s32.totalorder 1, %s12
      %p161 = scmp.lt.s32.totalorder %s12, 3
      %p162 = pnand %p160, %p161
      %p163 = pneg %p162
      // Predicated region
      $region9: #{tpu_custom_call.1} parent=5 // pred_check
        _
      $region10: #{tpu_custom_call.1} parent=5 // pred_check_branch
        %165 = sbr.rel (%p162) target = $region12
      $region11: #{tpu_custom_call.1} parent=5 // pred_region
        %s166 = ssub.s32 %s12, 1
        // Predicated region
        $region13: #{tpu_custom_call.1} parent=11 // pred_check
          %p167 = pneg %p96
        $region14: #{tpu_custom_call.1} parent=11 // pred_check_branch
          %169 = sbr.rel (%p167) target = $region16
        $region15: #{tpu_custom_call.1} parent=11 // pred_region
          %p170 = scmp.lt.s32.totalorder %s24, 0
          %s171 = scalar_select %p170, %s24, 0
          %p172 = scmp.lt.s32.totalorder %s26, 0
          %s173 = scalar_select %p172, %s26, 0
          %s174 = sadd.s32 %s173, %s171
          %s175 = smul.addr %s174, 8
          %s176 = scalar_lea.vmem %s1, %s175
        $region16: #{tpu_custom_call.1} parent=11 // pred_fallthru
          _
        // Predicated region
        $region17: #{tpu_custom_call.1} parent=11 // pred_check
          %p177 = pneg %p122
        $region18: #{tpu_custom_call.1} parent=11 // pred_check_branch
          %179 = sbr.rel (%p177) target = $region20
        $region19: #{tpu_custom_call.1} parent=11 // pred_region
          %p180 = scmp.lt.s32.totalorder %s24, 0
          %s181 = scalar_select %p180, %s24, 0
          %s182 = smul.addr %s181, 8
          %s183 = scalar_lea.vmem %s2, %s182
        $region20: #{tpu_custom_call.1} parent=11 // pred_fallthru
          _
      $region12: #{tpu_custom_call.1} parent=5 // pred_fallthru
        _
      %p184 = scmp.lt.s32.totalorder %s12, 2
      // Predicated region
      $region21: #{tpu_custom_call.1} parent=5 // pred_check
        %p185 = pneg %p184
      $region22: #{tpu_custom_call.1} parent=5 // pred_check_branch
        %187 = sbr.rel (%p185) target = $region24
      $region23: #{tpu_custom_call.1} parent=5 // pred_region
        // Predicated region
        $region25: #{tpu_custom_call.1} parent=23 // pred_check
          %p188 = pneg %p62
        $region26: #{tpu_custom_call.1} parent=23 // pred_check_branch
          %190 = sbr.rel (%p188) target = $region28
        $region27: #{tpu_custom_call.1} parent=23 // pred_region
          %s191 = smul.u32 2, %s21
          %p192 = scmp.lt.s32.totalorder %s19, 1
          %s193 = scalar_select %p192, %s19, 1
          %p194 = scmp.lt.s32.totalorder %s22, 0
          %s195 = scalar_select %p194, %s22, 0
          %p196 = scmp.lt.s32.totalorder %s191, 1
          %s197 = scalar_select %p196, %s191, 1
          %s198 = smul.addr %s195, 2
          %s199 = sadd.s32 %s197, %s198
          %s200 = smul.addr %s193, 2
          %s201 = sadd.s32 %s199, %s200
          %s202 = smul.addr %s201, 4
          %s203 = scalar_lea.vmem %s0, %s202
          %s204 = smul.u32 2, %s21
        $region28: #{tpu_custom_call.1} parent=23 // pred_fallthru
          _
      $region24: #{tpu_custom_call.1} parent=5 // pred_fallthru
        _
      %p205 = scmp.le.s32.totalorder 1, %s12
      %p206 = scmp.lt.s32.totalorder %s12, 3
      %p207 = pnand %p205, %p206
      %p208 = pneg %p207
      // Predicated region
      $region29: #{tpu_custom_call.1} parent=5 // pred_check
        _
      $region30: #{tpu_custom_call.1} parent=5 // pred_check_branch
        %210 = sbr.rel (%p207) target = $region32
      $region31: #{tpu_custom_call.1} parent=5 // pred_region
        %s211 = ssub.s32 %s12, 1
        %s212 = smul.u32 2, %s25
        %p213 = scmp.lt.s32.totalorder %s23, 1
        %s214 = scalar_select %p213, %s23, 1
        %p215 = scmp.lt.s32.totalorder %s26, 0
        %s216 = scalar_select %p215, %s26, 0
        %p217 = scmp.lt.s32.totalorder %s212, 1
        %s218 = scalar_select %p217, %s212, 1
        %s219 = smul.addr %s216, 2
        %s220 = sadd.s32 %s218, %s219
        %s221 = smul.addr %s214, 2
        %s222 = sadd.s32 %s220, %s221
        %s223 = smul.addr %s222, 4
        %s224 = scalar_lea.vmem %s0, %s223
        %p225 = pneg %p68
        %p226 = pneg %p65
        %p227 = scmp.lt.s32.totalorder %s24, 0
        %s228 = scalar_select %p227, %s24, 0
        %p229 = scmp.lt.s32.totalorder %s26, 0
        %s230 = scalar_select %p229, %s26, 0
        %s231 = sadd.s32 %s230, %s228
        %s232 = smul.addr %s231, 8
        %s233 = scalar_lea.vmem %s1, %s232
        %p234 = pneg %p96
        %p235 = pneg %p93
        %p236 = scmp.lt.s32.totalorder %s24, 0
        %s237 = scalar_select %p236, %s24, 0
        %s238 = smul.addr %s237, 8
        %s239 = scalar_lea.vmem %s2, %s238
        %p240 = pneg %p122
        %p241 = pneg %p119
        %p242 = pneg %p152
        %p243 = pneg %p149
        %s244 = sand.u32 %s139, 1
        %s245 = scalar_lea.sflag [#allocation4], %s244
        %s246 = sand.u32 %s139, 1
        %s247 = smul.addr %s246, 16
        %s248 = scalar_lea.vmem [#allocation3], %s247
        %s249 = smul.u32 2, %s25
        %p250 = scmp.lt.s32.totalorder %s23, 1
        %s251 = scalar_select %p250, %s23, 1
        %p252 = scmp.lt.s32.totalorder %s26, 0
        %s253 = scalar_select %p252, %s26, 0
        %p254 = scmp.lt.s32.totalorder %s249, 1
        %s255 = scalar_select %p254, %s249, 1
        %s256 = smul.addr %s253, 2
        %s257 = sadd.s32 %s255, %s256
        %s258 = smul.addr %s251, 2
        %s259 = sadd.s32 %s257, %s258
        %s260 = smul.addr %s259, 4
        %s261 = scalar_lea.vmem %s0, %s260
        %s262 = smul.u32 2, %s25
        %p263 = scmp.lt.s32.totalorder %s24, 0
        %s264 = scalar_select %p263, %s24, 0
        %p265 = scmp.lt.s32.totalorder %s26, 0
        %s266 = scalar_select %p265, %s26, 0
        %s267 = sadd.s32 %s266, %s264
        %s268 = smul.addr %s267, 8
        %s269 = scalar_lea.vmem %s1, %s268
        %p270 = scmp.lt.s32.totalorder %s24, 0
        %s271 = scalar_select %p270, %s24, 0
        %s272 = smul.addr %s271, 8
        %s273 = scalar_lea.vmem %s2, %s272
        %s274 = smul.u32 2, %s25
        %p275 = scmp.eq.s32.totalorder %s26, 0
        // Predicated region
        $region33: #{tpu_custom_call.1} parent=31 // pred_check
          %p276 = pneg %p275
        $region34: #{tpu_custom_call.1} parent=31 // pred_check_branch
          %278 = sbr.rel (%p276) target = $region36
        $region35: #{tpu_custom_call.1} parent=31 // pred_region
          %279 = vst [vmem:[#allocation2] sm:$0xff] 0.0
          %280 = vst [vmem:[#allocation2 + $0x8] sm:$0xff] 0.0
        $region36: #{tpu_custom_call.1} parent=31 // pred_fallthru
          _
        %v281 = vld [vmem:[#allocation2] sm:$0xff]
        %v282 = vld [vmem:[#allocation2 + $0x8] sm:$0xff]
        %v283 = vld [vmem:[%s269] sm:$0xff]
        %v284 = vld [vmem:[%s261] sm:$0xff]
        %v286 = vcombine.high %v284, %v284
        %vm287 = vcmask 31744
        %v289 = vsel %vm287, %v283, 0
        %vm291 = vcmask 1043456
        %v292 = vsel %vm291, %v284, 0
        %v294 = vsel %vm291, %v286, 0
        %296 = vmatprep.subr.mxu0 0.0
        %297 = vmatpush1.msra.mxu0 0.0
        %298 = vmatprep.subr.mxu0 0.0
        %299 = vmatpush1.msra.mxu0 0.0
        %300 = vmatprep.subr.mxu0 0.0
        %301 = vmatpush1.msra.mxu0 0.0
        %302 = vmatprep.subr.mxu0 0.0
        %303 = vmatpush1.msra.mxu0 0.0
        %304 = vmatprep.subr.mxu0 0.0
        %305 = vmatpush1.msra.mxu0 0.0
        %306 = vmatprep.subr.mxu0 0.0
        %307 = vmatpush1.msra.mxu0 0.0
        %308 = vmatprep.subr.mxu0 0.0
        %309 = vmatpush1.msra.mxu0 0.0
        %310 = vmatprep.subr.mxu0 0.0
        %311 = vmatpush1.msra.mxu0 0.0
        %312 = vmatprep.subr.mxu0 0.0
        %313 = vmatpush1.msra.mxu0 0.0
        %314 = vmatprep.subr.mxu0 0.0
        %315 = vmatpush1.msra.mxu0 0.0
        %316 = vmatprep.subr.mxu0 0.0
        %317 = vmatpush1.msra.mxu0 0.0
        %318 = vmatprep.subr.mxu0 0.0
        %319 = vmatpush1.msra.mxu0 0.0
        %320 = vmatprep.subr.mxu0 0.0
        %321 = vmatpush1.msra.mxu0 0.0
        %322 = vmatprep.subr.mxu0 0.0
        %323 = vmatpush1.msra.mxu0 0.0
        %324 = vmatprep.subr.mxu0 0.0
        %325 = vmatpush1.msra.mxu0 0.0
        %326 = vmatprep.subr.mxu0 %v294
        %327 = vmatpush1.msra.mxu0 %v292
        %328 = vmatprep.subr.mxu0 0.0
        %329 = vmatpush2.msra.mxu0 0.0
        %330 = vmatprep.subr.mxu0 0.0
        %331 = vmatpush2.msra.mxu0 0.0
        %332 = vmatprep.subr.mxu0 0.0
        %333 = vmatpush2.msra.mxu0 0.0
        %334 = vmatprep.subr.mxu0 0.0
        %335 = vmatpush2.msra.mxu0 0.0
        %336 = vmatprep.subr.mxu0 0.0
        %337 = vmatpush2.msra.mxu0 0.0
        %338 = vmatprep.subr.mxu0 0.0
        %339 = vmatpush2.msra.mxu0 0.0
        %340 = vmatprep.subr.mxu0 0.0
        %341 = vmatpush2.msra.mxu0 0.0
        %342 = vmatprep.subr.mxu0 0.0
        %343 = vmatpush2.msra.mxu0 0.0
        %344 = vmatprep.subr.mxu0 0.0
        %345 = vmatpush2.msra.mxu0 0.0
        %346 = vmatprep.subr.mxu0 0.0
        %347 = vmatpush2.msra.mxu0 0.0
        %348 = vmatprep.subr.mxu0 0.0
        %349 = vmatpush2.msra.mxu0 0.0
        %350 = vmatprep.subr.mxu0 0.0
        %351 = vmatpush2.msra.mxu0 0.0
        %352 = vmatprep.subr.mxu0 0.0
        %353 = vmatpush2.msra.mxu0 0.0
        %354 = vmatprep.subr.mxu0 0.0
        %355 = vmatpush2.msra.mxu0 0.0
        %356 = vmatprep.subr.mxu0 0.0
        %357 = vmatpush2.msra.mxu0 0.0
        %358 = vmatprep.subr.mxu0 0.0
        %359 = vmatpush2.msra.mxu0 0.0
        %360 = vmatprep.mubr.f32.mxu0 0.0
        %361 = vmatmul.mubr.f32.gmra.mxu0 %v289
        %v362 = vpop.f32.mrf.mxu0
        %v363 = vadd.f32 0.0, %v362
        %v364 = vpop.f32.mrf.mxu0
        %v365 = vadd.f32 0.0, %v364
        %366 = vdwg.mxu0
        %v367 = vadd.f32 %v281, %v363
        %v368 = vadd.f32 %v282, %v365
        %369 = vst [vmem:[#allocation2] sm:$0xff] %v367
        %370 = vst [vmem:[#allocation2 + $0x8] sm:$0xff] %v368
        // Predicated region
        $region37: #{tpu_custom_call.1} parent=31 // pred_check
          %p371 = pneg %p275
        $region38: #{tpu_custom_call.1} parent=31 // pred_check_branch
          %373 = sbr.rel (%p371) target = $region40
        $region39: #{tpu_custom_call.1} parent=31 // pred_region
          %v374 = vld [vmem:[#allocation2] sm:$0xff]
          %v375 = vld [vmem:[#allocation2 + $0x8] sm:$0xff]
          %v376 = vld [vmem:[%s273] sm:$0xff]
          %378 = vset.pattern.permute.xlu0 0
          %379 = vperm.xlu0 %378, %v376
          %v380 = vpop.permute.xlu0 %379
          %v382 = vadd.f32 %v374, %v380
          %v383 = vadd.f32 %v375, %v380
          %v384 = vmax.f32 %v382, 0.0
          %v385 = vmax.f32 %v383, 0.0
          %386 = vst [vmem:[%s248] sm:$0xff] %v384
          %387 = vst [vmem:[%s248 + $0x8] sm:$0xff] %v385
        $region40: #{tpu_custom_call.1} parent=31 // pred_fallthru
          _
        %s388 = sand.u32 %s139, 1
        %s389 = scalar_lea.sflag [#allocation4], %s388
        %s390 = sand.u32 %s139, 1
        %s391 = smul.addr %s390, 16
        %s392 = scalar_lea.vmem [#allocation3], %s391
        // Predicated region
        $region41: #{tpu_custom_call.1} parent=31 // pred_check
          %p393 = pneg %p149
        $region42: #{tpu_custom_call.1} parent=31 // pred_check_branch
          %395 = sbr.rel (%p393) target = $region44
        $region43: #{tpu_custom_call.1} parent=31 // pred_region
          %s396 = smul.u32 2, %s25
          %s398 = ssub.s32 256, 256
          %399 = vsyncadd %s389, %s398
          %s400 = smul.addr %s24, 2
          %s401 = sadd.s32 %s396, %s400
          %s402 = smul.addr %s23, 2
          %s403 = sadd.s32 %s401, %s402
          %s404 = smul.addr %s403, 128
          %s405 = scalar_lea.hbm %s3, %s404
          %s407 = sshll.u32 %s392, 4
          %s408 = int_to_ptr.vmem [resolvable:$true] %s407
          %410 = dma.vmem_to_hbm [thread:$0]  %s408, 256, %s405, %s389
        $region44: #{tpu_custom_call.1} parent=31 // pred_fallthru
          _
      $region32: #{tpu_custom_call.1} parent=5 // pred_fallthru
        _
      %p411 = scmp.le.s32.totalorder 2, %s12
      // Predicated region
      $region45: #{tpu_custom_call.1} parent=5 // pred_check
        %p412 = pneg %p411
      $region46: #{tpu_custom_call.1} parent=5 // pred_check_branch
        %414 = sbr.rel (%p412) target = $region48
      $region47: #{tpu_custom_call.1} parent=5 // pred_region
        %s415 = ssub.s32 %s12, 2
        // Predicated region
        $region49: #{tpu_custom_call.1} parent=47 // pred_check
          %p416 = pneg %p155
        $region50: #{tpu_custom_call.1} parent=47 // pred_check_branch
          %418 = sbr.rel (%p416) target = $region52
        $region51: #{tpu_custom_call.1} parent=47 // pred_region
          %s419 = sand.u32 %s140, 1
          %s420 = scalar_lea.sflag [#allocation4], %s419
          %s421 = sand.u32 %s140, 1
          %s422 = smul.addr %s421, 16
          %s423 = scalar_lea.vmem [#allocation3], %s422
          %424 = dma.done %s420, 256
        $region52: #{tpu_custom_call.1} parent=47 // pred_fallthru
          _
      $region48: #{tpu_custom_call.1} parent=5 // pred_fallthru
        _
    $region6: #{tpu_custom_call.1} parent=1 // loop_footer
      %s16 = sadd.s32 1, %s12
    $region7: #{tpu_custom_call.1} parent=1 // loop_footer_branch
      %11 = sbr.rel target = $region3
    $region8: #{tpu_custom_call.1} parent=1 // loop_exit
      _
    %425 = vsyncpa [#allocation4], 1
    %s426 = scalar_lea.sflag [#allocation4], 1
    %427 = vsyncpa %s426, 1

</llo_original>
